<compile_context>
chip_gen: v5e
topology: v5e:2x2
jax: 0.10.0
libtpu: 0.0.40
codegen_flags: <defaults>
</compile_context>

<pallas_src>
import functools

import jax
import jax.numpy as jnp
from jax.experimental import pallas as pl
from jax.experimental.pallas import tpu as pltpu

_LANE = 128


def _round_up(x, m):
    return ((x + m - 1) // m) * m


def _cdiv(a, b):
    return (a + b - 1) // b


def _sublane_multiple(dtype):
    # Min second-minor tile: 8 rows for 32-bit, 16 for bf16, 32 for int8.
    return max(8, 32 // jnp.dtype(dtype).itemsize)


def _usable_vmem_bytes():
    """Generation-aware usable VMEM (per TensorCore), with headroom."""
    cap = 64 * 1024 * 1024  # conservative fallback = v7x per-TC physical VMEM
    try:
        info = pltpu.get_tpu_info()
        cap = int(getattr(info, "vmem_capacity_bytes", cap))
    except Exception:
        pass
    return int(cap * 0.75)


def _resident_spec(shape):
    """BlockSpec for a block that is identical for every grid step
    (weights / biases): constant index_map + single buffering."""
    index_map = lambda i: (0,) * len(shape)
    try:
        return pl.BlockSpec(shape, index_map, pipeline_mode=pl.Buffered(1))
    except Exception:  # fallback if pipeline_mode/Buffered unavailable
        return pl.BlockSpec(shape, index_map)


def _fused_mlp_kernel(*refs, num_layers):
    """refs = (x_ref, w_1..w_L, b_1..b_L, out_ref).

    x_ref:  [TILE_M, K0]              (unpadded feature dim)
    w_i:    [K_{i-1}(_pad), K_i_pad]  (pre-transposed; output dims lane-padded)
    b_i:    [1, K_i_pad]
    out_ref:[TILE_M, K_L_pad]
    """
    x_ref = refs[0]
    w_refs = refs[1:1 + num_layers]
    b_refs = refs[1 + num_layers:1 + 2 * num_layers]
    out_ref = refs[1 + 2 * num_layers]

    h = x_ref[...].astype(w_refs[0].dtype)
    for i in range(num_layers):
        # MXU matmul with f32 accumulation; bias add in f32.
        h = jnp.dot(h, w_refs[i][...], preferred_element_type=jnp.float32)
        h = h + b_refs[i][...].astype(jnp.float32)
        if i < num_layers - 1:
            nxt = w_refs[i + 1].dtype
            if jnp.dtype(nxt) == jnp.float32:
                h = jnp.maximum(h, 0.0)          # f32 epilogue (v5e / f32 path)
            else:
                h = jnp.maximum(h.astype(nxt), jnp.zeros((), nxt))  # bf16 VPU
    out_ref[...] = h.astype(out_ref.dtype)


def init_mlp_params(key, input_dim, hidden_dim, output_dim, num_layers):
    """PyTorch nn.Linear-style params: W is [out, in], b is [out]."""
    h = [hidden_dim] * (num_layers - 1)
    in_dims = [input_dim] + h
    out_dims = h + [output_dim]
    params = []
    for n_in, n_out in zip(in_dims, out_dims):
        key, kw, kb = jax.random.split(key, 3)
        bound = 1.0 / jnp.sqrt(jnp.float32(n_in))
        w = jax.random.uniform(kw, (n_out, n_in), jnp.float32, -bound, bound)
        b = jax.random.uniform(kb, (n_out,), jnp.float32, -bound, bound)
        params.append((w, b))
    return params


def prepare_mlp_params(params, param_dtype=jnp.float32):
    """One-time conversion for the kernel: transpose W to [in, out] and
    zero-pad every *output* feature dim up to a multiple of 128 (lane-dense).
    The very first input dim is left unpadded so x needs no host padding.
    Use param_dtype=jnp.bfloat16 for production-size FFNs on any generation
    (MXU peak is bf16; accumulation stays f32 inside the kernel)."""
    dims = [params[0][0].shape[1]] + [w.shape[0] for w, _ in params]
    dims_pad = [dims[0]] + [_round_up(d, _LANE) for d in dims[1:]]
    prepped = []
    for i, (w, b) in enumerate(params):
        n_out, n_in = w.shape
        w_t = jnp.pad(w.T.astype(param_dtype),
                      ((0, dims_pad[i] - n_in), (0, dims_pad[i + 1] - n_out)))
        b_p = jnp.pad(b.astype(param_dtype).reshape(1, n_out),
                      ((0, 0), (0, dims_pad[i + 1] - n_out)))
        prepped.append((w_t, b_p))
    return prepped


def mlp_forward(x, prepped_params, output_dim, tile_m=512):
    """x: [..., input_dim]; fused Linear(+ReLU) stack, single pallas_call."""
    num_layers = len(prepped_params)
    lead_shape = x.shape[:-1]
    k_in = x.shape[-1]
    x2d = x.reshape(-1, k_in)
    m = x2d.shape[0]

    w_list = [w for w, _ in prepped_params]
    b_list = [b for _, b in prepped_params]
    assert w_list[0].shape[0] == k_in, "input_dim mismatch with prepared params"
    n_out_pad = w_list[-1].shape[1]
    param_dtype = w_list[0].dtype
    max_feat_pad = max([k_in] + [w.shape[1] for w in w_list])

    # Row tile: multiple of the dtype's sublane packing, no larger than m.
    sub = max(_sublane_multiple(x.dtype), _sublane_multiple(param_dtype))
    tile_m = max(sub, min(tile_m, _round_up(m, sub)))
    tile_m = _round_up(tile_m, sub)
    # v7x: give both TensorCores at least one row tile when m is big enough.
    if _cdiv(m, tile_m) == 1 and m > 2 * sub:
        tile_m = _round_up(_cdiv(m, 2), sub)

    # Per-TC VMEM budget: resident params (single-buffered) + double-buffered
    # x/out tiles + f32 intermediates, with headroom; shrink tile_m to fit.
    usable_vmem = _usable_vmem_bytes()
    param_bytes = sum(int(a.size) * a.dtype.itemsize for a in w_list + b_list)

    def _vmem_estimate(t):
        io_bytes = 2 * t * (k_in * x2d.dtype.itemsize
                            + n_out_pad * jnp.dtype(x.dtype).itemsize)
        act_bytes = 3 * t * max_feat_pad * 4   # live f32 intermediates
        return int((param_bytes + io_bytes + act_bytes) * 1.25) + (2 << 20)

    while _vmem_estimate(tile_m) > usable_vmem and tile_m > sub:
        tile_m = max(sub, _round_up(tile_m // 2, sub))
    vmem_bytes = int(min(usable_vmem, max(_vmem_estimate(tile_m), 8 << 20)))

    grid = (_cdiv(m, tile_m),)

    # x uses its full (unpadded) feature dim — exempt from the 128-lane rule.
    in_specs = [pl.BlockSpec((tile_m, k_in), lambda i: (i, 0))]
    in_specs += [_resident_spec(w.shape) for w in w_list]
    in_specs += [_resident_spec(b.shape) for b in b_list]
    out_spec = pl.BlockSpec((tile_m, n_out_pad), lambda i: (i, 0))

    flops = 2 * m * sum(w.shape[0] * w.shape[1] for w in w_list)
    bytes_accessed = (int(x2d.size) * x2d.dtype.itemsize + param_bytes
                      + m * n_out_pad * jnp.dtype(x.dtype).itemsize)

    kernel = functools.partial(_fused_mlp_kernel, num_layers=num_layers)
    out_p = pl.pallas_call(
        kernel,
        out_shape=jax.ShapeDtypeStruct((m, n_out_pad), x.dtype),
        grid=grid,
        in_specs=in_specs,
        out_specs=out_spec,
        compiler_params=pltpu.CompilerParams(
            dimension_semantics=("parallel",),
            vmem_limit_bytes=vmem_bytes),
        cost_estimate=pl.CostEstimate(flops=flops, transcendentals=0,
                                      bytes_accessed=bytes_accessed),
    )(x2d, *w_list, *b_list)

    # Only the lane slice remains (rows are already exact since m is unpadded);
    # it's a no-op when output_dim is already a multiple of 128.
    out = out_p[:, :output_dim] if output_dim != n_out_pad else out_p
    return out.reshape(*lead_shape, output_dim)


def mlp_reference(x, params):
    num_layers = len(params)
    for i, (w, b) in enumerate(params):
        x = x @ w.T + b
        if i < num_layers - 1:
            x = jnp.maximum(x, 0.0)
    return x


if __name__ == "__main__":
    # Small shapes consistent with the DETR MLP (bbox head):
    # batch=2, num_queries=8, input_dim=32, hidden_dim=32, output_dim=8, 3 layers.
    batch, seq = 2, 8
    input_dim, hidden_dim, output_dim, num_layers = 32, 32, 8, 3

    key = jax.random.PRNGKey(0)
    kx, kp = jax.random.split(key)
    x = jax.random.normal(kx, (batch, seq, input_dim), jnp.float32)
    params = init_mlp_params(kp, input_dim, hidden_dim, output_dim, num_layers)

    # One-time weight prep (transpose + output-dim lane padding). Keep f32 here
    # for a tight tolerance check; use param_dtype=jnp.bfloat16 in production.
    prepped = prepare_mlp_params(params, param_dtype=jnp.float32)

    fwd = jax.jit(lambda xi, pi: mlp_forward(xi, pi, output_dim))
    out = fwd(x, prepped)
    out = jax.block_until_ready(out)

    ref = mlp_reference(x, params)
    assert out.shape == (batch, seq, output_dim), out.shape
    assert jnp.allclose(out, ref, atol=1e-5, rtol=1e-5), "mismatch vs reference"

    print("KERNEL_OK")
</pallas_src>

<mosaic_0001>
module attributes {stable_mosaic.version = 11 : i64} {
  func.func @_fused_mlp_kernel(%arg0: i32, %arg1: memref<16x32xf32, #tpu.memory_space<vmem>>, %arg2: memref<32x128xf32, #tpu.memory_space<vmem>>, %arg3: memref<128x128xf32, #tpu.memory_space<vmem>>, %arg4: memref<128x128xf32, #tpu.memory_space<vmem>>, %arg5: memref<1x128xf32, #tpu.memory_space<vmem>>, %arg6: memref<1x128xf32, #tpu.memory_space<vmem>>, %arg7: memref<1x128xf32, #tpu.memory_space<vmem>>, %arg8: memref<16x128xf32, #tpu.memory_space<vmem>>) attributes {dimension_semantics = [#tpu.dimension_semantics<parallel>], iteration_bounds = array<i64: 1>, scalar_prefetch = 0 : i64, scratch_operands = 0 : i64, tpu.core_type = #tpu.core_type<tc>, window_params = [{transform_indices = @transform_0, window_bounds = array<i64: 16, 32>}, {pipeline_mode = #tpu.pipeline_mode<synchronous>, transform_indices = @transform_1, window_bounds = array<i64: 32, 128>}, {pipeline_mode = #tpu.pipeline_mode<synchronous>, transform_indices = @transform_2, window_bounds = array<i64: 128, 128>}, {pipeline_mode = #tpu.pipeline_mode<synchronous>, transform_indices = @transform_3, window_bounds = array<i64: 128, 128>}, {pipeline_mode = #tpu.pipeline_mode<synchronous>, transform_indices = @transform_4, window_bounds = array<i64: 1, 128>}, {pipeline_mode = #tpu.pipeline_mode<synchronous>, transform_indices = @transform_5, window_bounds = array<i64: 1, 128>}, {pipeline_mode = #tpu.pipeline_mode<synchronous>, transform_indices = @transform_6, window_bounds = array<i64: 1, 128>}, {transform_indices = @transform_7, window_bounds = array<i64: 16, 128>}]} {
    %c0 = arith.constant 0 : index
    %c0_0 = arith.constant 0 : index
    %0 = vector.load %arg1[%c0, %c0_0] : memref<16x32xf32, #tpu.memory_space<vmem>>, vector<16x32xf32>
    %c0_1 = arith.constant 0 : index
    %c0_2 = arith.constant 0 : index
    %1 = vector.load %arg2[%c0_1, %c0_2] : memref<32x128xf32, #tpu.memory_space<vmem>>, vector<32x128xf32>
    %cst = arith.constant dense<0.000000e+00> : vector<16x128xf32>
    %2 = tpu.matmul %0, %1, %cst {dimension_numbers = #tpu.dot_dimension_numbers<[1], [0], [0], [1], [0, 0, 1, 1], [], []>} : vector<16x32xf32>, vector<32x128xf32>, vector<16x128xf32> -> vector<16x128xf32>
    %c0_3 = arith.constant 0 : index
    %c0_4 = arith.constant 0 : index
    %3 = vector.load %arg5[%c0_3, %c0_4] : memref<1x128xf32, #tpu.memory_space<vmem>>, vector<1x128xf32>
    %4 = vector.broadcast %3 : vector<1x128xf32> to vector<16x128xf32>
    %5 = arith.addf %2, %4 : vector<16x128xf32>
    %cst_5 = arith.constant 0.000000e+00 : f32
    %6 = vector.broadcast %cst_5 : f32 to vector<16x128xf32>
    %7 = arith.maximumf %5, %6 : vector<16x128xf32>
    %c0_6 = arith.constant 0 : index
    %c0_7 = arith.constant 0 : index
    %8 = vector.load %arg3[%c0_6, %c0_7] : memref<128x128xf32, #tpu.memory_space<vmem>>, vector<128x128xf32>
    %cst_8 = arith.constant dense<0.000000e+00> : vector<16x128xf32>
    %9 = tpu.matmul %7, %8, %cst_8 {dimension_numbers = #tpu.dot_dimension_numbers<[1], [0], [0], [1], [0, 0, 1, 1], [], []>} : vector<16x128xf32>, vector<128x128xf32>, vector<16x128xf32> -> vector<16x128xf32>
    %c0_9 = arith.constant 0 : index
    %c0_10 = arith.constant 0 : index
    %10 = vector.load %arg6[%c0_9, %c0_10] : memref<1x128xf32, #tpu.memory_space<vmem>>, vector<1x128xf32>
    %11 = vector.broadcast %10 : vector<1x128xf32> to vector<16x128xf32>
    %12 = arith.addf %9, %11 : vector<16x128xf32>
    %cst_11 = arith.constant 0.000000e+00 : f32
    %13 = vector.broadcast %cst_11 : f32 to vector<16x128xf32>
    %14 = arith.maximumf %12, %13 : vector<16x128xf32>
    %c0_12 = arith.constant 0 : index
    %c0_13 = arith.constant 0 : index
    %15 = vector.load %arg4[%c0_12, %c0_13] : memref<128x128xf32, #tpu.memory_space<vmem>>, vector<128x128xf32>
    %cst_14 = arith.constant dense<0.000000e+00> : vector<16x128xf32>
    %16 = tpu.matmul %14, %15, %cst_14 {dimension_numbers = #tpu.dot_dimension_numbers<[1], [0], [0], [1], [0, 0, 1, 1], [], []>} : vector<16x128xf32>, vector<128x128xf32>, vector<16x128xf32> -> vector<16x128xf32>
    %c0_15 = arith.constant 0 : index
    %c0_16 = arith.constant 0 : index
    %17 = vector.load %arg7[%c0_15, %c0_16] : memref<1x128xf32, #tpu.memory_space<vmem>>, vector<1x128xf32>
    %18 = vector.broadcast %17 : vector<1x128xf32> to vector<16x128xf32>
    %19 = arith.addf %16, %18 : vector<16x128xf32>
    %c0_17 = arith.constant 0 : index
    %c0_18 = arith.constant 0 : index
    %20 = vector.load %arg8[%c0_17, %c0_18] : memref<16x128xf32, #tpu.memory_space<vmem>>, vector<16x128xf32>
    tpu.vector_store %arg8[%c0_17, %c0_18], %19 {strides = array<i32>} : memref<16x128xf32, #tpu.memory_space<vmem>>, vector<16x128xf32>,
    return
  }
  func.func @transform_0(%arg0: i32) -> (i32, i32) {
    %c0_i32 = arith.constant 0 : i32
    %c0_i32_0 = arith.constant 0 : i32
    return %arg0, %c0_i32 : i32, i32
  }
  func.func @transform_1(%arg0: i32) -> (i32, i32) {
    %c0_i32 = arith.constant 0 : i32
    %c0_i32_0 = arith.constant 0 : i32
    %c0_i32_1 = arith.constant 0 : i32
    return %c0_i32, %c0_i32_0 : i32, i32
  }
  func.func @transform_2(%arg0: i32) -> (i32, i32) {
    %c0_i32 = arith.constant 0 : i32
    %c0_i32_0 = arith.constant 0 : i32
    %c0_i32_1 = arith.constant 0 : i32
    return %c0_i32, %c0_i32_0 : i32, i32
  }
  func.func @transform_3(%arg0: i32) -> (i32, i32) {
    %c0_i32 = arith.constant 0 : i32
    %c0_i32_0 = arith.constant 0 : i32
    %c0_i32_1 = arith.constant 0 : i32
    return %c0_i32, %c0_i32_0 : i32, i32
  }
  func.func @transform_4(%arg0: i32) -> (i32, i32) {
    %c0_i32 = arith.constant 0 : i32
    %c0_i32_0 = arith.constant 0 : i32
    %c0_i32_1 = arith.constant 0 : i32
    return %c0_i32, %c0_i32_0 : i32, i32
  }
  func.func @transform_5(%arg0: i32) -> (i32, i32) {
    %c0_i32 = arith.constant 0 : i32
    %c0_i32_0 = arith.constant 0 : i32
    %c0_i32_1 = arith.constant 0 : i32
    return %c0_i32, %c0_i32_0 : i32, i32
  }
  func.func @transform_6(%arg0: i32) -> (i32, i32) {
    %c0_i32 = arith.constant 0 : i32
    %c0_i32_0 = arith.constant 0 : i32
    %c0_i32_1 = arith.constant 0 : i32
    return %c0_i32, %c0_i32_0 : i32, i32
  }
  func.func @transform_7(%arg0: i32) -> (i32, i32) {
    %c0_i32 = arith.constant 0 : i32
    %c0_i32_0 = arith.constant 0 : i32
    return %arg0, %c0_i32 : i32, i32
  }
}

</mosaic_0001>

<llo_original>
// kernel: _lambda_.1
$region0: #{_lambda_.1}
  #allocation0 [shape = 'u32[]', space=smem, size = 0x4, offset = 0x4, fixed_abs, tag = 'smem constant byte address 0x4 - core index']
  #allocation1 [shape = 'u32[72,128]{1,0:T(1,128)}', space=vmem, size = 0x9000, scoped, tag = 'internal scratch']
  %s0 = inlined_call_operand.hbm [shape: f32[16,32], index: 0, kind: input, shape index: {}]
  %s1 = inlined_call_operand.hbm [shape: f32[32,128], index: 1, kind: input, shape index: {}]
  %s2 = inlined_call_operand.hbm [shape: f32[128,128], index: 2, kind: input, shape index: {}]
  %s3 = inlined_call_operand.hbm [shape: f32[128,128], index: 3, kind: input, shape index: {}]
  %s4 = inlined_call_operand.vmem [shape: f32[1,128], index: 4, kind: input, shape index: {}]
  %s5 = inlined_call_operand.vmem [shape: f32[1,128], index: 5, kind: input, shape index: {}]
  %s6 = inlined_call_operand.vmem [shape: f32[1,128], index: 6, kind: input, shape index: {}]
  %s7 = inlined_call_operand.vmem [shape: f32[16,128], index: 7, kind: output, shape index: {}]
  %s8 = sld [smem:[#allocation0]]
  $region54: #{_lambda_.1} parent=0
    _
  %s10 = ssub.s32 1, %s8
  %s11 = scalar_select 0, %s10, %s8
  $region1: #{_lambda_.1} parent=0
    #allocation2 [shape = 'u8[8192]{0}', space=vmem, size = 0x2000, scoped, tag = 'input window, operand 0, single buffered']
    #allocation3 [shape = 's32[1]{0}', space=sflag, size = 0x4, scoped, tag = 'scoped memory for _lambda_.1']
    #allocation4 [shape = 'u8[16384]{0}', space=vmem, size = 0x4000, scoped, tag = 'input window, operand 1, single buffered']
    #allocation5 [shape = 's32[1]{0}', space=sflag, size = 0x4, scoped, tag = 'scoped memory for _lambda_.1']
    #allocation6 [shape = 'u8[65536]{0}', space=vmem, size = 0x10000, scoped, tag = 'input window, operand 2, single buffered']
    #allocation7 [shape = 'u8[65536]{0}', space=vmem, size = 0x10000, scoped, tag = 'input window, operand 3, single buffered']
    #allocation8 [shape = 's32[1]{0}', space=sflag, size = 0x4, scoped, tag = 'scoped memory for _lambda_.1']
    %12 = vsyncpa [#allocation3], 0
    %13 = vsyncpa [#allocation5], 0
    %14 = vsyncpa [#allocation8], 0
    // Predicated region
    $region2: #{_lambda_.1} parent=1 // pred_check
      _
    $region3: #{_lambda_.1} parent=1 // pred_check_branch
      %16 = sbr.rel (0) target = $region5
    $region4: #{_lambda_.1} parent=1 // pred_region
      %18 = vsyncadd [#allocation3], 0
      %s19 = sshll.u32 %s0, 4
      %s20 = int_to_ptr.hbm [resolvable:$true] %s19
      %s21 = sshll.u32 [#allocation2], 4
      %s22 = int_to_ptr.vmem [resolvable:$true] %s21
      %27 = dma.hbm_to_vmem [thread:$0]  %s20, 256, %s22, [#allocation3], 128, 128, 8
    $region5: #{_lambda_.1} parent=1 // pred_fallthru
      _
    // Predicated region
    $region6: #{_lambda_.1} parent=1 // pred_check
      _
    $region7: #{_lambda_.1} parent=1 // pred_check_branch
      %29 = sbr.rel (0) target = $region9
    $region8: #{_lambda_.1} parent=1 // pred_region
      %31 = vsyncadd [#allocation5], 0
      %s32 = sshll.u32 %s1, 4
      %s33 = int_to_ptr.hbm [resolvable:$true] %s32
      %s34 = sshll.u32 [#allocation4], 4
      %s35 = int_to_ptr.vmem [resolvable:$true] %s34
      %40 = dma.hbm_to_vmem [thread:$0]  %s33, 512, %s35, [#allocation5], 128, 128, 8
    $region9: #{_lambda_.1} parent=1 // pred_fallthru
      _
    // Predicated region
    $region10: #{_lambda_.1} parent=1 // pred_check
      _
    $region11: #{_lambda_.1} parent=1 // pred_check_branch
      %42 = sbr.rel (0) target = $region13
    $region12: #{_lambda_.1} parent=1 // pred_region
      %44 = vsyncadd [#allocation5], 0
      %s45 = sshll.u32 %s2, 4
      %s46 = int_to_ptr.hbm [resolvable:$true] %s45
      %s47 = sshll.u32 [#allocation6], 4
      %s48 = int_to_ptr.vmem [resolvable:$true] %s47
      %53 = dma.hbm_to_vmem [thread:$0]  %s46, 2048, %s48, [#allocation5], 128, 128, 8
    $region13: #{_lambda_.1} parent=1 // pred_fallthru
      _
    // Predicated region
    $region14: #{_lambda_.1} parent=1 // pred_check
      _
    $region15: #{_lambda_.1} parent=1 // pred_check_branch
      %55 = sbr.rel (0) target = $region17
    $region16: #{_lambda_.1} parent=1 // pred_region
      %57 = vsyncadd [#allocation8], 0
      %s58 = sshll.u32 %s3, 4
      %s59 = int_to_ptr.hbm [resolvable:$true] %s58
      %s60 = sshll.u32 [#allocation7], 4
      %s61 = int_to_ptr.vmem [resolvable:$true] %s60
      %66 = dma.hbm_to_vmem [thread:$0]  %s59, 2048, %s61, [#allocation8], 128, 128, 8
    $region17: #{_lambda_.1} parent=1 // pred_fallthru
      _
    // Predicated region
    $region18: #{_lambda_.1} parent=1 // pred_check
      _
    $region19: #{_lambda_.1} parent=1 // pred_check_branch
      %68 = sbr.rel (0) target = $region21
    $region20: #{_lambda_.1} parent=1 // pred_region
      _
    $region21: #{_lambda_.1} parent=1 // pred_fallthru
      _
    // Predicated region
    $region22: #{_lambda_.1} parent=1 // pred_check
      _
    $region23: #{_lambda_.1} parent=1 // pred_check_branch
      %70 = sbr.rel (0) target = $region25
    $region24: #{_lambda_.1} parent=1 // pred_region
      _
    $region25: #{_lambda_.1} parent=1 // pred_fallthru
      _
    // Predicated region
    $region26: #{_lambda_.1} parent=1 // pred_check
      _
    $region27: #{_lambda_.1} parent=1 // pred_check_branch
      %72 = sbr.rel (0) target = $region29
    $region28: #{_lambda_.1} parent=1 // pred_region
      _
    $region29: #{_lambda_.1} parent=1 // pred_fallthru
      _
    // Predicated region
    $region30: #{_lambda_.1} parent=1 // pred_check
      _
    $region31: #{_lambda_.1} parent=1 // pred_check_branch
      %74 = sbr.rel (0) target = $region33
    $region32: #{_lambda_.1} parent=1 // pred_region
      %76 = dma.done [#allocation3], 256
    $region33: #{_lambda_.1} parent=1 // pred_fallthru
      _
    // Predicated region
    $region34: #{_lambda_.1} parent=1 // pred_check
      _
    $region35: #{_lambda_.1} parent=1 // pred_check_branch
      %78 = sbr.rel (0) target = $region37
    $region36: #{_lambda_.1} parent=1 // pred_region
      %80 = dma.done [#allocation5], 512
    $region37: #{_lambda_.1} parent=1 // pred_fallthru
      _
    // Predicated region
    $region38: #{_lambda_.1} parent=1 // pred_check
      _
    $region39: #{_lambda_.1} parent=1 // pred_check_branch
      %82 = sbr.rel (0) target = $region41
    $region40: #{_lambda_.1} parent=1 // pred_region
      %84 = dma.done [#allocation5], 2048
    $region41: #{_lambda_.1} parent=1 // pred_fallthru
      _
    // Predicated region
    $region42: #{_lambda_.1} parent=1 // pred_check
      _
    $region43: #{_lambda_.1} parent=1 // pred_check_branch
      %86 = sbr.rel (0) target = $region45
    $region44: #{_lambda_.1} parent=1 // pred_region
      %88 = dma.done [#allocation8], 2048
    $region45: #{_lambda_.1} parent=1 // pred_fallthru
      _
    %v89 = vld [vmem:[#allocation2] sm:$0xff]
    %v90 = vld [vmem:[#allocation2 + $0x8] sm:$0xff]
    %v91 = vld [vmem:[#allocation4] sm:$0xff]
    %v92 = vld [vmem:[#allocation4 + $0x8] sm:$0xff]
    %v93 = vld [vmem:[#allocation4 + $0x10] sm:$0xff]
    %v94 = vld [vmem:[#allocation4 + $0x18] sm:$0xff]
    %v95 = vld [vmem:[%s4] sm:$0x1]
    %v97 = vperm.slane %v95, 0
    %vm99 = vcmask 261120
    %v101 = vsel %vm99, %v89, 0
    %v104 = vsel %vm99, %v90, 0
    %106 = vmatpush.msra.mxu0 0.0
    %107 = vmatpush.msra.mxu0 0.0
    %108 = vmatpush.msra.mxu0 0.0
    %109 = vmatpush.msra.mxu0 0.0
    %110 = vmatpush.msra.mxu0 0.0
    %111 = vmatpush.msra.mxu0 0.0
    %112 = vmatpush.msra.mxu0 0.0
    %113 = vmatpush.msra.mxu0 0.0
    %114 = vmatpush.msra.mxu0 0.0
    %115 = vmatpush.msra.mxu0 0.0
    %116 = vmatpush.msra.mxu0 0.0
    %117 = vmatpush.msra.mxu0 0.0
    %118 = vmatpush.msra.mxu0 %v94
    %119 = vmatpush.msra.mxu0 %v93
    %120 = vmatpush.msra.mxu0 %v92
    %121 = vmatpush.msra.mxu0 %v91
    %122 = vmatmul.f32.gmra.mxu0 %v101
    %v123 = vpop.f32.mrf.mxu0
    %v124 = vadd.f32 %v97, %v123
    %125 = vmatmul.f32.gmra.mxu0 %v104
    %v126 = vpop.f32.mrf.mxu0
    %v127 = vadd.f32 %v97, %v126
    %128 = vdwg.mxu0
    %v129 = vmax.f32 %v124, 0.0
    %v130 = vmax.f32 %v127, 0.0
    %v131 = vld [vmem:[#allocation6] sm:$0xff]
    %v132 = vld [vmem:[#allocation6 + $0x8] sm:$0xff]
    %v133 = vld [vmem:[#allocation6 + $0x10] sm:$0xff]
    %v134 = vld [vmem:[#allocation6 + $0x18] sm:$0xff]
    %v135 = vld [vmem:[#allocation6 + $0x20] sm:$0xff]
    %v136 = vld [vmem:[#allocation6 + $0x28] sm:$0xff]
    %v137 = vld [vmem:[#allocation6 + $0x30] sm:$0xff]
    %v138 = vld [vmem:[#allocation6 + $0x38] sm:$0xff]
    %v139 = vld [vmem:[#allocation6 + $0x40] sm:$0xff]
    %v140 = vld [vmem:[#allocation6 + $0x48] sm:$0xff]
    %v141 = vld [vmem:[#allocation6 + $0x50] sm:$0xff]
    %v142 = vld [vmem:[#allocation6 + $0x58] sm:$0xff]
    %v143 = vld [vmem:[#allocation6 + $0x60] sm:$0xff]
    %v144 = vld [vmem:[#allocation6 + $0x68] sm:$0xff]
    %v145 = vld [vmem:[#allocation6 + $0x70] sm:$0xff]
    %v146 = vld [vmem:[#allocation6 + $0x78] sm:$0xff]
    %v147 = vld [vmem:[%s5] sm:$0x1]
    %v149 = vperm.slane %v147, 0
    %151 = vmatpush.msra.mxu0 %v146
    %152 = vmatpush.msra.mxu0 %v145
    %153 = vmatpush.msra.mxu0 %v144
    %154 = vmatpush.msra.mxu0 %v143
    %155 = vmatpush.msra.mxu0 %v142
    %156 = vmatpush.msra.mxu0 %v141
    %157 = vmatpush.msra.mxu0 %v140
    %158 = vmatpush.msra.mxu0 %v139
    %159 = vmatpush.msra.mxu0 %v138
    %160 = vmatpush.msra.mxu0 %v137
    %161 = vmatpush.msra.mxu0 %v136
    %162 = vmatpush.msra.mxu0 %v135
    %163 = vmatpush.msra.mxu0 %v134
    %164 = vmatpush.msra.mxu0 %v133
    %165 = vmatpush.msra.mxu0 %v132
    %166 = vmatpush.msra.mxu0 %v131
    %167 = vmatmul.f32.gmra.mxu0 %v129
    %v168 = vpop.f32.mrf.mxu0
    %v169 = vadd.f32 %v149, %v168
    %170 = vmatmul.f32.gmra.mxu0 %v130
    %v171 = vpop.f32.mrf.mxu0
    %v172 = vadd.f32 %v149, %v171
    %173 = vdwg.mxu0
    %v174 = vmax.f32 %v169, 0.0
    %v175 = vmax.f32 %v172, 0.0
    %v176 = vld [vmem:[#allocation7] sm:$0xff]
    %v177 = vld [vmem:[#allocation7 + $0x8] sm:$0xff]
    %v178 = vld [vmem:[#allocation7 + $0x10] sm:$0xff]
    %v179 = vld [vmem:[#allocation7 + $0x18] sm:$0xff]
    %v180 = vld [vmem:[#allocation7 + $0x20] sm:$0xff]
    %v181 = vld [vmem:[#allocation7 + $0x28] sm:$0xff]
    %v182 = vld [vmem:[#allocation7 + $0x30] sm:$0xff]
    %v183 = vld [vmem:[#allocation7 + $0x38] sm:$0xff]
    %v184 = vld [vmem:[#allocation7 + $0x40] sm:$0xff]
    %v185 = vld [vmem:[#allocation7 + $0x48] sm:$0xff]
    %v186 = vld [vmem:[#allocation7 + $0x50] sm:$0xff]
    %v187 = vld [vmem:[#allocation7 + $0x58] sm:$0xff]
    %v188 = vld [vmem:[#allocation7 + $0x60] sm:$0xff]
    %v189 = vld [vmem:[#allocation7 + $0x68] sm:$0xff]
    %v190 = vld [vmem:[#allocation7 + $0x70] sm:$0xff]
    %v191 = vld [vmem:[#allocation7 + $0x78] sm:$0xff]
    %v192 = vld [vmem:[%s6] sm:$0x1]
    %v194 = vperm.slane %v192, 0
    %196 = vmatpush.msra.mxu0 %v191
    %197 = vmatpush.msra.mxu0 %v190
    %198 = vmatpush.msra.mxu0 %v189
    %199 = vmatpush.msra.mxu0 %v188
    %200 = vmatpush.msra.mxu0 %v187
    %201 = vmatpush.msra.mxu0 %v186
    %202 = vmatpush.msra.mxu0 %v185
    %203 = vmatpush.msra.mxu0 %v184
    %204 = vmatpush.msra.mxu0 %v183
    %205 = vmatpush.msra.mxu0 %v182
    %206 = vmatpush.msra.mxu0 %v181
    %207 = vmatpush.msra.mxu0 %v180
    %208 = vmatpush.msra.mxu0 %v179
    %209 = vmatpush.msra.mxu0 %v178
    %210 = vmatpush.msra.mxu0 %v177
    %211 = vmatpush.msra.mxu0 %v176
    %212 = vmatmul.f32.gmra.mxu0 %v174
    %v213 = vpop.f32.mrf.mxu0
    %v214 = vadd.f32 %v194, %v213
    %215 = vmatmul.f32.gmra.mxu0 %v175
    %v216 = vpop.f32.mrf.mxu0
    %v217 = vadd.f32 %v194, %v216
    %218 = vdwg.mxu0
    %219 = vst [vmem:[%s7] sm:$0xff] %v214
    %220 = vst [vmem:[%s7 + $0x8] sm:$0xff] %v217
    // Predicated region
    $region46: #{_lambda_.1} parent=1 // pred_check
      _
    $region47: #{_lambda_.1} parent=1 // pred_check_branch
      %222 = sbr.rel (0) target = $region49
    $region48: #{_lambda_.1} parent=1 // pred_region
      _
    $region49: #{_lambda_.1} parent=1 // pred_fallthru
      _
    // Predicated region
    $region50: #{_lambda_.1} parent=1 // pred_check
      _
    $region51: #{_lambda_.1} parent=1 // pred_check_branch
      %224 = sbr.rel (0) target = $region53
    $region52: #{_lambda_.1} parent=1 // pred_region
      _
    $region53: #{_lambda_.1} parent=1 // pred_fallthru
      _
    %225 = vsyncpa [#allocation3], 1
    %226 = vsyncpa [#allocation5], 1
    %227 = vsyncpa [#allocation8], 1

</llo_original>
